<compile_context>
chip_gen: v6e
topology: v6e:2x2x1
jax: 0.10.0
libtpu: 0.0.40
codegen_flags: <defaults>
</compile_context>

<pallas_src>
import math

import jax
import jax.numpy as jnp
from jax.experimental import pallas as pl
from jax.experimental.pallas import tpu as pltpu


_LANE = 128
_MIN_SPLIT_BYTES = 1 << 20  # only split a 1x1 grid for megacore above this size


def _pe_add_kernel(x_ref, pe_ref, o_ref):
    # x_ref / o_ref: (TB, TL) tile of the flattened (B, S*E) activations.
    # pe_ref:        (1,  TL) float32 tile of the flattened positional encoding,
    #                broadcast over the row (batch) axis via jnp broadcasting.
    x = x_ref[...]
    o_ref[...] = (x.astype(jnp.float32) + pe_ref[...]).astype(o_ref.dtype)


def make_positional_encoding(embed_dim: int, max_len: int = 5000) -> jnp.ndarray:
    """Deterministic pe buffer, shape (1, max_len, embed_dim), matching PyTorch init."""
    positions = jnp.arange(max_len, dtype=jnp.float32)[:, None]            # (max_len, 1)
    div = jnp.exp(
        -(math.log(10000.0) / embed_dim)
        * jnp.arange(0, embed_dim, 2, dtype=jnp.float32)
    )                                                                      # (E//2,)
    angles = positions * div                                               # (max_len, E//2)
    pe = jnp.zeros((max_len, embed_dim), dtype=jnp.float32)
    pe = pe.at[:, 0::2].set(jnp.sin(angles))
    pe = pe.at[:, 1::2].set(jnp.cos(angles))
    return pe[None, :, :]                                                  # (1, max_len, E)


def _tpu_vmem_capacity_bytes() -> int:
    try:
        return int(pltpu.get_tpu_info().vmem_capacity_bytes)
    except Exception:
        return 64 << 20  # conservative (v7x per-TC VMEM)


def _default_tile_bytes() -> int:
    # ~8 MiB tiles on 128 MiB-VMEM parts (v5e/v6e), ~4 MiB on 64 MiB parts (v7x).
    return (8 << 20) if _tpu_vmem_capacity_bytes() >= (96 << 20) else (4 << 20)


def _sublane_multiple(itemsize: int) -> int:
    # f32 -> 8 sublanes, bf16/f16 -> 16, int8/fp8 -> 32 (packed sublanes).
    return max(8, 32 // max(itemsize, 1))


def _choose_tiles(batch: int, flat: int, itemsize: int, tile_bytes: int):
    """Pick (row_tile, lane_tile) for the flattened (batch, flat) layout.

    Row tile is a multiple of the dtype sublane group (or the full batch);
    lane tile is a multiple of 128 (or the full flattened extent).
    """
    sub = _sublane_multiple(itemsize)

    # Row tile: as many full rows as fit in the budget, sublane-aligned.
    row_bytes = max(flat * itemsize, 1)
    rows_fit = tile_bytes // row_bytes
    if rows_fit >= batch:
        tb = batch
    elif rows_fit >= sub:
        tb = (rows_fit // sub) * sub
    else:
        # A sublane group of rows already exceeds the budget: keep the row tile
        # at one sublane group (or the full batch if smaller) and tile lanes.
        tb = min(batch, sub)

    # Lane tile: full extent if it fits, otherwise a multiple of 128.
    if tb * flat * itemsize <= tile_bytes or flat <= _LANE:
        tl = flat
    else:
        tl = max(_LANE, (tile_bytes // (tb * itemsize)) // _LANE * _LANE)
        tl = min(tl, flat)

    # Megacore (v7x, 2 TCs): if a mid/large input collapsed to a single block,
    # split once along a safe axis so both cores get work. Skip tiny inputs.
    total_bytes = batch * flat * itemsize
    if tb >= batch and tl >= flat and total_bytes >= _MIN_SPLIT_BYTES:
        if batch >= 2 * sub:
            tb = max(sub, (batch // 2) // sub * sub)
        elif flat >= 2 * _LANE:
            tl = max(_LANE, (flat // 2) // _LANE * _LANE)

    return tb, tl


def positional_encoding_forward(
    x: jnp.ndarray, pe: jnp.ndarray, tile_bytes: int | None = None
) -> jnp.ndarray:
    """x: (B, S, E); pe: (1, max_len, E) float32. Returns x + pe[:, :S, :]."""
    B, S, E = x.shape
    SE = S * E
    itemsize = jnp.dtype(x.dtype).itemsize

    vmem_cap = _tpu_vmem_capacity_bytes()
    vmem_budget = min(48 << 20, (vmem_cap * 3) // 4)
    if tile_bytes is None:
        tile_bytes = _default_tile_bytes()
    # Keep the double-buffered x/out tiles comfortably within the VMEM budget.
    tile_bytes = max(8 << 10, min(tile_bytes, (vmem_budget - (4 << 20)) // 4))

    # Glue (outside the kernel): static slice of the buffer and free contiguous
    # reshapes to the lane-dense 2-D layout. pe stays float32; the add happens
    # in f32 inside the kernel and only the result is cast to x.dtype.
    pe_flat = pe[:, :S, :].reshape(1, SE).astype(jnp.float32)
    x_flat = x.reshape(B, SE)

    tb, tl = _choose_tiles(B, SE, itemsize, tile_bytes)

    # Lane tiles are the OUTER grid axis, row tiles the INNER one, so pe's
    # block index is invariant along the inner axis (no per-step re-DMA of pe).
    grid = (pl.cdiv(SE, tl), pl.cdiv(B, tb))

    x_spec = pl.BlockSpec((tb, tl), lambda j, i: (i, j))
    out_spec = pl.BlockSpec((tb, tl), lambda j, i: (i, j))
    pe_spec = pl.BlockSpec((1, tl), lambda j, i: (0, j))

    # VMEM estimate: x + out double-buffered, pe double-buffered (f32), headroom.
    need = 2 * 2 * (tb * tl * itemsize) + 2 * (tl * 4)
    vmem_limit = int(min(max(need + (4 << 20), 16 << 20), vmem_budget))

    out_flat = pl.pallas_call(
        _pe_add_kernel,
        out_shape=jax.ShapeDtypeStruct((B, SE), x.dtype),
        grid_spec=pltpu.PrefetchScalarGridSpec(
            num_scalar_prefetch=0,
            grid=grid,
            in_specs=[x_spec, pe_spec],
            out_specs=out_spec,
        ),
        compiler_params=pltpu.CompilerParams(
            dimension_semantics=("parallel", "parallel"),
            vmem_limit_bytes=vmem_limit,
        ),
    )(x_flat, pe_flat)

    return out_flat.reshape(B, S, E)


if __name__ == "__main__":
    # Small shapes consistent with the module (batch=2, seq=8, emb=32).
    B, S, E = 2, 8, 32
    max_len = 64

    key = jax.random.PRNGKey(0)
    k1, k2, k3 = jax.random.split(key, 3)
    pe = make_positional_encoding(E, max_len=max_len)

    # 1) Single-block path.
    x = jax.random.normal(k1, (B, S, E), dtype=jnp.float32)
    out = jax.block_until_ready(positional_encoding_forward(x, pe))
    ref = x + pe[:, :S, :]
    assert out.shape == (B, S, E)
    assert jnp.allclose(out, ref, atol=1e-6, rtol=1e-6), "mismatch vs reference"

    # 2) Multi-row-tile grid (pe grid-invariant along the inner row axis).
    B2 = 16
    x2 = jax.random.normal(k2, (B2, S, E), dtype=jnp.float32)
    out2 = jax.block_until_ready(
        positional_encoding_forward(x2, pe, tile_bytes=10 * 1024)
    )
    ref2 = x2 + pe[:, :S, :]
    assert jnp.allclose(out2, ref2, atol=1e-6, rtol=1e-6), "mismatch (row-tiled path)"

    # 3) Lane-tiled grid (both axes constrained; lane tile a multiple of 128).
    B3, S3 = 4, 64
    pe3 = make_positional_encoding(E, max_len=128)
    x3 = jax.random.normal(k3, (B3, S3, E), dtype=jnp.float32)
    out3 = jax.block_until_ready(
        positional_encoding_forward(x3, pe3, tile_bytes=16 * 1024)
    )
    ref3 = x3 + pe3[:, :S3, :]
    assert jnp.allclose(out3, ref3, atol=1e-6, rtol=1e-6), "mismatch (lane-tiled path)"

    print("KERNEL_OK")
</pallas_src>

<mosaic_0001>
module attributes {stable_mosaic.version = 11 : i64} {
  func.func @_pe_add_kernel(%arg0: i32, %arg1: i32, %arg2: memref<2x256xf32, #tpu.memory_space<vmem>>, %arg3: memref<1x256xf32, #tpu.memory_space<vmem>>, %arg4: memref<2x256xf32, #tpu.memory_space<vmem>>) attributes {dimension_semantics = [#tpu.dimension_semantics<parallel>, #tpu.dimension_semantics<parallel>], iteration_bounds = array<i64: 1, 1>, scalar_prefetch = 0 : i64, scratch_operands = 0 : i64, tpu.core_type = #tpu.core_type<tc>, window_params = [{transform_indices = @transform_0, window_bounds = array<i64: 2, 256>}, {transform_indices = @transform_1, window_bounds = array<i64: 1, 256>}, {transform_indices = @transform_2, window_bounds = array<i64: 2, 256>}]} {
    %c0 = arith.constant 0 : index
    %c0_0 = arith.constant 0 : index
    %0 = vector.load %arg2[%c0, %c0_0] : memref<2x256xf32, #tpu.memory_space<vmem>>, vector<2x256xf32>
    %c0_1 = arith.constant 0 : index
    %c0_2 = arith.constant 0 : index
    %1 = vector.load %arg3[%c0_1, %c0_2] : memref<1x256xf32, #tpu.memory_space<vmem>>, vector<1x256xf32>
    %2 = vector.broadcast %1 : vector<1x256xf32> to vector<2x256xf32>
    %3 = arith.addf %0, %2 : vector<2x256xf32>
    %c0_3 = arith.constant 0 : index
    %c0_4 = arith.constant 0 : index
    %4 = vector.load %arg4[%c0_3, %c0_4] : memref<2x256xf32, #tpu.memory_space<vmem>>, vector<2x256xf32>
    tpu.vector_store %arg4[%c0_3, %c0_4], %3 {strides = array<i32>} : memref<2x256xf32, #tpu.memory_space<vmem>>, vector<2x256xf32>,
    return
  }
  func.func @transform_0(%arg0: i32, %arg1: i32) -> (i32, i32) {
    %c0_i32 = arith.constant 0 : i32
    return %arg1, %arg0 : i32, i32
  }
  func.func @transform_1(%arg0: i32, %arg1: i32) -> (i32, i32) {
    %c0_i32 = arith.constant 0 : i32
    %c0_i32_0 = arith.constant 0 : i32
    return %c0_i32, %arg0 : i32, i32
  }
  func.func @transform_2(%arg0: i32, %arg1: i32) -> (i32, i32) {
    %c0_i32 = arith.constant 0 : i32
    return %arg1, %arg0 : i32, i32
  }
}

</mosaic_0001>

<llo_original>
// kernel: tpu_custom_call.1
$region0: #{tpu_custom_call.1}
  #allocation0 [shape = 'u32[]', space=smem, size = 0x4, offset = 0x4, fixed_abs, tag = 'smem constant byte address 0x4 - core index']
  #allocation1 [shape = 'u32[144,128]{1,0:T(1,128)}', space=vmem, size = 0x12000, scoped, tag = 'internal scratch']
  %s0 = inlined_call_operand.hbm [shape: f32[2,256], index: 0, kind: input, shape index: {}]
  %s1 = inlined_call_operand.hbm [shape: f32[1,256], index: 1, kind: input, shape index: {}]
  %s2 = inlined_call_operand.hbm [shape: f32[2,256], index: 2, kind: output, shape index: {}]
  %s3 = sld [smem:[#allocation0]]
  $region26: #{tpu_custom_call.1} parent=0
    _
  %s5 = ssub.s32 1, %s3
  %s6 = scalar_select 0, %s5, %s3
  $region1: #{tpu_custom_call.1} parent=0
    #allocation2 [shape = 'u8[2048]{0}', space=vmem, size = 0x800, scoped, tag = 'input window, operand 0, single buffered']
    #allocation3 [shape = 's32[1]{0}', space=sflag, size = 0x4, scoped, tag = 'scoped memory for tpu_custom_call.1']
    #allocation4 [shape = 's32[1]{0}', space=sflag, size = 0x4, scoped, tag = 'scoped memory for tpu_custom_call.1']
    #allocation5 [shape = 'u8[1024]{0}', space=vmem, size = 0x400, scoped, tag = 'input window, operand 1, single buffered']
    #allocation6 [shape = 's32[1]{0}', space=sflag, size = 0x4, scoped, tag = 'scoped memory for tpu_custom_call.1']
    #allocation7 [shape = 'u8[2048]{0}', space=vmem, size = 0x800, scoped, tag = 'output window, operand 0, single buffered']
    %7 = vsyncpa [#allocation3], 0
    %8 = vsyncpa [#allocation6], 0
    %9 = vsyncpa [#allocation4], 0
    // Predicated region
    $region2: #{tpu_custom_call.1} parent=1 // pred_check
      _
    $region3: #{tpu_custom_call.1} parent=1 // pred_check_branch
      %11 = sbr.rel (0) target = $region5
    $region4: #{tpu_custom_call.1} parent=1 // pred_region
      %s13 = ssub.s32 64, 64
      %14 = vsyncadd [#allocation3], %s13
      %s16 = sshll.u32 [#allocation2], 4
      %s17 = int_to_ptr.vmem [resolvable:$true] %s16
      %19 = dma.hbm_to_vmem [thread:$0]  %s0, 64, %s17, [#allocation3]
    $region5: #{tpu_custom_call.1} parent=1 // pred_fallthru
      _
    // Predicated region
    $region6: #{tpu_custom_call.1} parent=1 // pred_check
      _
    $region7: #{tpu_custom_call.1} parent=1 // pred_check_branch
      %21 = sbr.rel (0) target = $region9
    $region8: #{tpu_custom_call.1} parent=1 // pred_region
      %s23 = ssub.s32 32, 32
      %24 = vsyncadd [#allocation6], %s23
      %s26 = sshll.u32 [#allocation5], 4
      %s27 = int_to_ptr.vmem [resolvable:$true] %s26
      %29 = dma.hbm_to_vmem [thread:$0]  %s1, 32, %s27, [#allocation6]
    $region9: #{tpu_custom_call.1} parent=1 // pred_fallthru
      _
    // Predicated region
    $region10: #{tpu_custom_call.1} parent=1 // pred_check
      _
    $region11: #{tpu_custom_call.1} parent=1 // pred_check_branch
      %31 = sbr.rel (0) target = $region13
    $region12: #{tpu_custom_call.1} parent=1 // pred_region
      %32 = dma.done [#allocation3], 64
    $region13: #{tpu_custom_call.1} parent=1 // pred_fallthru
      _
    // Predicated region
    $region14: #{tpu_custom_call.1} parent=1 // pred_check
      _
    $region15: #{tpu_custom_call.1} parent=1 // pred_check_branch
      %34 = sbr.rel (0) target = $region17
    $region16: #{tpu_custom_call.1} parent=1 // pred_region
      %35 = dma.done [#allocation6], 32
    $region17: #{tpu_custom_call.1} parent=1 // pred_fallthru
      _
    %v36 = vld [vmem:[#allocation2] sm:$0xf]
    %v37 = vld [vmem:[#allocation5] sm:$0x3]
    %v39 = vlaneseq
    %v40 = vshrl.u32 %v39, 7
    %v41 = vsub.s32 0, %v40
    %v42 = vrot.slane %v37, %v41
    %v43 = vlaneseq
    %v44 = vshrl.u32 %v43, 7
    %v45 = vsub.s32 1, %v44
    %v46 = vrot.slane %v37, %v45
    %v47 = vcombine.low %v42, %v46
    %v49 = vunpack.c.l.s4 1983009808
    %v50 = vunpack.c.0.s8 %v49
    %v51 = vlaneseq
    %v52 = vshrl.u32 %v51, 7
    %v53 = vsub.s32 %v50, %v52
    %v54 = vrot.slane %v47, %v53
    %v56 = vadd.f32 %v36, %v54
    %57 = vst [vmem:[#allocation7] sm:$0xf] %v56
    // Predicated region
    $region18: #{tpu_custom_call.1} parent=1 // pred_check
      _
    $region19: #{tpu_custom_call.1} parent=1 // pred_check_branch
      %59 = sbr.rel (0) target = $region21
    $region20: #{tpu_custom_call.1} parent=1 // pred_region
      %s61 = ssub.s32 64, 64
      %62 = vsyncadd [#allocation4], %s61
      %s64 = sshll.u32 [#allocation7], 4
      %s65 = int_to_ptr.vmem [resolvable:$true] %s64
      %67 = dma.vmem_to_hbm [thread:$0]  %s65, 64, %s2, [#allocation4]
    $region21: #{tpu_custom_call.1} parent=1 // pred_fallthru
      _
    // Predicated region
    $region22: #{tpu_custom_call.1} parent=1 // pred_check
      _
    $region23: #{tpu_custom_call.1} parent=1 // pred_check_branch
      %69 = sbr.rel (0) target = $region25
    $region24: #{tpu_custom_call.1} parent=1 // pred_region
      %70 = dma.done [#allocation4], 64
    $region25: #{tpu_custom_call.1} parent=1 // pred_fallthru
      _
    %71 = vsyncpa [#allocation3], 1
    %72 = vsyncpa [#allocation6], 1
    %73 = vsyncpa [#allocation4], 1

</llo_original>
